<compile_context>
chip_gen: v5e
topology: v5e:2x2
jax: 0.10.0
libtpu: 0.0.40
codegen_flags: <defaults>
</compile_context>

<pallas_src>
import functools

import jax
import jax.numpy as jnp
from jax.experimental import pallas as pl
from jax.experimental.pallas import tpu as pltpu


def _triplet_loss_kernel(a_ref, p_ref, n_ref, out_ref, *, margin, batch, block_rows):
    """One batch tile: per-row hinge losses -> masked partial sum.

    a/p/n_ref : (TB, D) VMEM tiles (upcast to f32 here).
    out_ref   : (1, 8, 128) lane-dense VMEM slab holding this block's partial sum.
    """
    i = pl.program_id(0)

    a = a_ref[...].astype(jnp.float32)
    p = p_ref[...].astype(jnp.float32)
    n = n_ref[...].astype(jnp.float32)

    # Fused distance difference: ||a-p||^2 - ||a-n||^2 == sum_d (p-n)*(p+n-2a)
    d = p - n
    s = p + n - 2.0 * a
    diff = jnp.sum(d * s, axis=1, keepdims=True)             # (TB, 1)

    losses = jnp.maximum(diff + jnp.float32(margin), 0.0)    # (TB, 1) hinge

    # Mask padded tail rows (grid = cdiv(B, TB) may overrun the true batch).
    row_ids = i * block_rows + jax.lax.broadcasted_iota(jnp.int32, losses.shape, 0)
    losses = jnp.where(row_ids < batch, losses, 0.0)

    partial = jnp.sum(losses)
    # Lane-dense (8,128) store; the tiny cross-block reduction happens in JAX.
    out_ref[...] = jnp.full(out_ref.shape, partial, jnp.float32)


def _pick_block_rows(batch, feat, itemsize):
    # Keep each input tile <= ~2 MiB so 3 inputs x 2 pipeline buffers stay
    # comfortably under the scoped-VMEM defaults on v5e (16 MiB), v6e (32 MiB)
    # and v7x (32 MiB of 64 MiB physical).
    target_tile_bytes = 2 * 1024 * 1024
    max_rows = max(8, target_tile_bytes // max(feat * itemsize, 1))
    tb = min(batch, max_rows)
    if tb < batch:
        tb = max(8, (tb // 8) * 8)  # sublane-aligned unless it's the full batch
    return tb


def triplet_loss(anchor, positive, negative, margin, size_average=True,
                 block_rows=None):
    """Pallas TPU implementation of TripletLoss.forward.

    anchor/positive/negative: (B, D) arrays. Returns a scalar float32.
    """
    B, D = anchor.shape
    itemsize = jnp.dtype(anchor.dtype).itemsize
    tb = block_rows if block_rows is not None else _pick_block_rows(B, D, itemsize)
    tb = min(tb, B)
    grid = pl.cdiv(B, tb)

    kernel = functools.partial(
        _triplet_loss_kernel, margin=float(margin), batch=B, block_rows=tb)

    in_spec = pl.BlockSpec((tb, D), lambda i: (i, 0))

    partials = pl.pallas_call(
        kernel,
        grid=(grid,),
        in_specs=[in_spec, in_spec, in_spec],
        out_specs=pl.BlockSpec((1, 8, 128), lambda i: (i, 0, 0)),
        out_shape=jax.ShapeDtypeStruct((grid, 8, 128), jnp.float32),
        compiler_params=pltpu.CompilerParams(
            dimension_semantics=("parallel",),
            vmem_limit_bytes=32 * 1024 * 1024,
        ),
        cost_estimate=pl.CostEstimate(
            flops=7 * B * D,
            transcendentals=0,
            bytes_accessed=3 * B * D * itemsize + grid * 8 * 128 * 4,
        ),
    )(anchor, positive, negative)

    total = jnp.sum(partials[:, 0, 0])
    if size_average:
        total = total / jnp.float32(B)
    return total


def _triplet_loss_ref(anchor, positive, negative, margin, size_average=True):
    a = anchor.astype(jnp.float32)
    p = positive.astype(jnp.float32)
    n = negative.astype(jnp.float32)
    dp = jnp.sum((a - p) ** 2, axis=1)
    dn = jnp.sum((a - n) ** 2, axis=1)
    losses = jax.nn.relu(dp - dn + margin)
    return jnp.mean(losses) if size_average else jnp.sum(losses)


if __name__ == "__main__":
    key = jax.random.PRNGKey(0)
    k_a, k_p, k_n = jax.random.split(key, 3)
    margin = 1.0

    # Test 1: small batch, single block (block covers full array).
    B, D = 8, 32
    anchor = jax.random.normal(k_a, (B, D), dtype=jnp.float32)
    positive = jax.random.normal(k_p, (B, D), dtype=jnp.float32)
    negative = jax.random.normal(k_n, (B, D), dtype=jnp.float32)

    loss_mean = triplet_loss(anchor, positive, negative, margin, size_average=True)
    loss_sum = triplet_loss(anchor, positive, negative, margin, size_average=False)
    jax.block_until_ready((loss_mean, loss_sum))

    ref_mean = _triplet_loss_ref(anchor, positive, negative, margin, True)
    ref_sum = _triplet_loss_ref(anchor, positive, negative, margin, False)
    assert jnp.allclose(loss_mean, ref_mean, rtol=1e-5, atol=1e-5), (loss_mean, ref_mean)
    assert jnp.allclose(loss_sum, ref_sum, rtol=1e-5, atol=1e-5), (loss_sum, ref_sum)

    # Test 2: multi-block grid with a padded tail (B=20, TB=8 -> 3 blocks,
    # last block masked) to exercise the tiled/parallel-partials path.
    B2, D2 = 20, 32
    k_a2, k_p2, k_n2 = jax.random.split(jax.random.PRNGKey(1), 3)
    a2 = jax.random.normal(k_a2, (B2, D2), dtype=jnp.float32)
    p2 = jax.random.normal(k_p2, (B2, D2), dtype=jnp.float32)
    n2 = jax.random.normal(k_n2, (B2, D2), dtype=jnp.float32)

    loss2_mean = triplet_loss(a2, p2, n2, margin, size_average=True, block_rows=8)
    loss2_sum = triplet_loss(a2, p2, n2, margin, size_average=False, block_rows=8)
    jax.block_until_ready((loss2_mean, loss2_sum))

    ref2_mean = _triplet_loss_ref(a2, p2, n2, margin, True)
    ref2_sum = _triplet_loss_ref(a2, p2, n2, margin, False)
    assert jnp.allclose(loss2_mean, ref2_mean, rtol=1e-5, atol=1e-5), (loss2_mean, ref2_mean)
    assert jnp.allclose(loss2_sum, ref2_sum, rtol=1e-5, atol=1e-5), (loss2_sum, ref2_sum)

    print("KERNEL_OK")
</pallas_src>

<mosaic_0001>
module attributes {stable_mosaic.version = 11 : i64} {
  func.func @_triplet_loss_kernel(%arg0: i32, %arg1: memref<8x32xf32, #tpu.memory_space<vmem>>, %arg2: memref<8x32xf32, #tpu.memory_space<vmem>>, %arg3: memref<8x32xf32, #tpu.memory_space<vmem>>, %arg4: memref<1x8x128xf32, #tpu.memory_space<vmem>>) attributes {dimension_semantics = [#tpu.dimension_semantics<parallel>], iteration_bounds = array<i64: 1>, scalar_prefetch = 0 : i64, scratch_operands = 0 : i64, tpu.core_type = #tpu.core_type<tc>, window_params = [{transform_indices = @transform_0, window_bounds = array<i64: 8, 32>}, {transform_indices = @transform_1, window_bounds = array<i64: 8, 32>}, {transform_indices = @transform_2, window_bounds = array<i64: 8, 32>}, {transform_indices = @transform_3, window_bounds = array<i64: 1, 8, 128>}]} {
    %c0 = arith.constant 0 : index
    %c0_0 = arith.constant 0 : index
    %0 = vector.load %arg1[%c0, %c0_0] : memref<8x32xf32, #tpu.memory_space<vmem>>, vector<8x32xf32>
    %c0_1 = arith.constant 0 : index
    %c0_2 = arith.constant 0 : index
    %1 = vector.load %arg2[%c0_1, %c0_2] : memref<8x32xf32, #tpu.memory_space<vmem>>, vector<8x32xf32>
    %c0_3 = arith.constant 0 : index
    %c0_4 = arith.constant 0 : index
    %2 = vector.load %arg3[%c0_3, %c0_4] : memref<8x32xf32, #tpu.memory_space<vmem>>, vector<8x32xf32>
    %3 = arith.subf %1, %2 : vector<8x32xf32>
    %4 = arith.addf %1, %2 : vector<8x32xf32>
    %cst = arith.constant 2.000000e+00 : f32
    %5 = vector.broadcast %cst : f32 to vector<8x32xf32>
    %6 = arith.mulf %5, %0 : vector<8x32xf32>
    %7 = arith.subf %4, %6 : vector<8x32xf32>
    %8 = arith.mulf %3, %7 : vector<8x32xf32>
    %cst_5 = arith.constant dense<0.000000e+00> : vector<8xf32>
    %9 = vector.multi_reduction <add>, %8, %cst_5 [1] : vector<8x32xf32> to vector<8xf32>
    %10 = vector.shape_cast %9 : vector<8xf32> to vector<8x1xf32>
    %cst_6 = arith.constant 1.000000e+00 : f32
    %11 = vector.broadcast %cst_6 : f32 to vector<8x1xf32>
    %12 = arith.addf %10, %11 : vector<8x1xf32>
    %cst_7 = arith.constant 0.000000e+00 : f32
    %13 = vector.broadcast %cst_7 : f32 to vector<8x1xf32>
    %14 = arith.maximumf %12, %13 : vector<8x1xf32>
    %c8_i32 = arith.constant 8 : i32
    %15 = arith.muli %arg0, %c8_i32 : i32
    %16 = tpu.iota {dimensions = array<i32: 0>} : vector<8x1xi32>
    %17 = vector.broadcast %15 : i32 to vector<8x1xi32>
    %18 = arith.addi %17, %16 : vector<8x1xi32>
    %c8_i32_8 = arith.constant 8 : i32
    %19 = vector.broadcast %c8_i32_8 : i32 to vector<8x1xi32>
    %20 = arith.cmpi slt, %18, %19 : vector<8x1xi32>
    %cst_9 = arith.constant 0.000000e+00 : f32
    %21 = vector.broadcast %cst_9 : f32 to vector<8x1xf32>
    %22 = arith.select %20, %14, %21 : vector<8x1xi1>, vector<8x1xf32>
    %23 = vector.shape_cast %22 : vector<8x1xf32> to vector<1x8x1xf32>
    %cst_10 = arith.constant dense<0.000000e+00> : vector<1xf32>
    %24 = vector.multi_reduction <add>, %23, %cst_10 [1, 2] : vector<1x8x1xf32> to vector<1xf32>
    %25 = vector.shape_cast %24 : vector<1xf32> to vector<1x1x1xf32>
    %26 = vector.extract %25[0, 0, 0] : f32 from vector<1x1x1xf32>
    %27 = vector.broadcast %26 : f32 to vector<1x8x128xf32>
    %c0_11 = arith.constant 0 : index
    %c0_12 = arith.constant 0 : index
    %c0_13 = arith.constant 0 : index
    %28 = vector.load %arg4[%c0_11, %c0_12, %c0_13] : memref<1x8x128xf32, #tpu.memory_space<vmem>>, vector<1x8x128xf32>
    tpu.vector_store %arg4[%c0_11, %c0_12, %c0_13], %27 {strides = array<i32>} : memref<1x8x128xf32, #tpu.memory_space<vmem>>, vector<1x8x128xf32>,
    return
  }
  func.func @transform_0(%arg0: i32) -> (i32, i32) {
    %c0_i32 = arith.constant 0 : i32
    %c0_i32_0 = arith.constant 0 : i32
    return %arg0, %c0_i32 : i32, i32
  }
  func.func @transform_1(%arg0: i32) -> (i32, i32) {
    %c0_i32 = arith.constant 0 : i32
    %c0_i32_0 = arith.constant 0 : i32
    return %arg0, %c0_i32 : i32, i32
  }
  func.func @transform_2(%arg0: i32) -> (i32, i32) {
    %c0_i32 = arith.constant 0 : i32
    %c0_i32_0 = arith.constant 0 : i32
    return %arg0, %c0_i32 : i32, i32
  }
  func.func @transform_3(%arg0: i32) -> (i32, i32, i32) {
    %c0_i32 = arith.constant 0 : i32
    %c0_i32_0 = arith.constant 0 : i32
    %c0_i32_1 = arith.constant 0 : i32
    return %arg0, %c0_i32, %c0_i32_0 : i32, i32, i32
  }
}

</mosaic_0001>

<llo_original>
// kernel: tpu_custom_call.1
$region0: #{tpu_custom_call.1}
  #allocation0 [shape = 'u32[]', space=smem, size = 0x4, offset = 0x4, fixed_abs, tag = 'smem constant byte address 0x4 - core index']
  #allocation1 [shape = 'u32[72,128]{1,0:T(1,128)}', space=vmem, size = 0x9000, scoped, tag = 'internal scratch']
  %s0 = inlined_call_operand.hbm [shape: f32[8,32], index: 0, kind: input, shape index: {}]
  %s1 = inlined_call_operand.hbm [shape: f32[8,32], index: 1, kind: input, shape index: {}]
  %s2 = inlined_call_operand.hbm [shape: f32[8,32], index: 2, kind: input, shape index: {}]
  %s3 = inlined_call_operand.hbm [shape: f32[1,8,128], index: 3, kind: output, shape index: {}]
  %s4 = sld [smem:[#allocation0]]
  $region34: #{tpu_custom_call.1} parent=0
    _
  %s6 = ssub.s32 1, %s4
  %s7 = scalar_select 0, %s6, %s4
  $region1: #{tpu_custom_call.1} parent=0
    #allocation2 [shape = 'u8[4096]{0}', space=vmem, size = 0x1000, scoped, tag = 'input window, operand 0, single buffered']
    #allocation3 [shape = 's32[1]{0}', space=sflag, size = 0x4, scoped, tag = 'scoped memory for tpu_custom_call.1']
    #allocation4 [shape = 's32[1]{0}', space=sflag, size = 0x4, scoped, tag = 'scoped memory for tpu_custom_call.1']
    #allocation5 [shape = 'u8[4096]{0}', space=vmem, size = 0x1000, scoped, tag = 'input window, operand 1, single buffered']
    #allocation6 [shape = 's32[1]{0}', space=sflag, size = 0x4, scoped, tag = 'scoped memory for tpu_custom_call.1']
    #allocation7 [shape = 'u8[4096]{0}', space=vmem, size = 0x1000, scoped, tag = 'input window, operand 2, single buffered']
    #allocation8 [shape = 'u8[4096]{0}', space=vmem, size = 0x1000, scoped, tag = 'output window, operand 0, single buffered']
    %8 = vsyncpa [#allocation3], 0
    %9 = vsyncpa [#allocation6], 0
    %10 = vsyncpa [#allocation4], 0
    // Predicated region
    $region2: #{tpu_custom_call.1} parent=1 // pred_check
      _
    $region3: #{tpu_custom_call.1} parent=1 // pred_check_branch
      %12 = sbr.rel (0) target = $region5
    $region4: #{tpu_custom_call.1} parent=1 // pred_region
      %14 = vsyncadd [#allocation3], 0
      %s16 = sshll.u32 %s0, 4
      %s17 = int_to_ptr.hbm [resolvable:$true] %s16
      %s18 = sshll.u32 [#allocation2], 4
      %s19 = int_to_ptr.vmem [resolvable:$true] %s18
      %21 = dma.hbm_to_vmem [thread:$0]  %s17, 128, %s19, [#allocation3]
    $region5: #{tpu_custom_call.1} parent=1 // pred_fallthru
      _
    // Predicated region
    $region6: #{tpu_custom_call.1} parent=1 // pred_check
      _
    $region7: #{tpu_custom_call.1} parent=1 // pred_check_branch
      %23 = sbr.rel (0) target = $region9
    $region8: #{tpu_custom_call.1} parent=1 // pred_region
      %25 = vsyncadd [#allocation6], 0
      %s27 = sshll.u32 %s1, 4
      %s28 = int_to_ptr.hbm [resolvable:$true] %s27
      %s29 = sshll.u32 [#allocation5], 4
      %s30 = int_to_ptr.vmem [resolvable:$true] %s29
      %32 = dma.hbm_to_vmem [thread:$0]  %s28, 128, %s30, [#allocation6]
    $region9: #{tpu_custom_call.1} parent=1 // pred_fallthru
      _
    // Predicated region
    $region10: #{tpu_custom_call.1} parent=1 // pred_check
      _
    $region11: #{tpu_custom_call.1} parent=1 // pred_check_branch
      %34 = sbr.rel (0) target = $region13
    $region12: #{tpu_custom_call.1} parent=1 // pred_region
      %36 = vsyncadd [#allocation6], 0
      %s38 = sshll.u32 %s2, 4
      %s39 = int_to_ptr.hbm [resolvable:$true] %s38
      %s40 = sshll.u32 [#allocation7], 4
      %s41 = int_to_ptr.vmem [resolvable:$true] %s40
      %43 = dma.hbm_to_vmem [thread:$0]  %s39, 128, %s41, [#allocation6]
    $region13: #{tpu_custom_call.1} parent=1 // pred_fallthru
      _
    // Predicated region
    $region14: #{tpu_custom_call.1} parent=1 // pred_check
      _
    $region15: #{tpu_custom_call.1} parent=1 // pred_check_branch
      %45 = sbr.rel (0) target = $region17
    $region16: #{tpu_custom_call.1} parent=1 // pred_region
      %47 = dma.done [#allocation3], 128
    $region17: #{tpu_custom_call.1} parent=1 // pred_fallthru
      _
    // Predicated region
    $region18: #{tpu_custom_call.1} parent=1 // pred_check
      _
    $region19: #{tpu_custom_call.1} parent=1 // pred_check_branch
      %49 = sbr.rel (0) target = $region21
    $region20: #{tpu_custom_call.1} parent=1 // pred_region
      %51 = dma.done [#allocation6], 128
    $region21: #{tpu_custom_call.1} parent=1 // pred_fallthru
      _
    // Predicated region
    $region22: #{tpu_custom_call.1} parent=1 // pred_check
      _
    $region23: #{tpu_custom_call.1} parent=1 // pred_check_branch
      %53 = sbr.rel (0) target = $region25
    $region24: #{tpu_custom_call.1} parent=1 // pred_region
      %55 = dma.done [#allocation6], 128
    $region25: #{tpu_custom_call.1} parent=1 // pred_fallthru
      _
    %v56 = vld [vmem:[#allocation2] sm:$0xff]
    %v57 = vld [vmem:[#allocation5] sm:$0xff]
    %v58 = vld [vmem:[#allocation7] sm:$0xff]
    %v59 = vsub.f32 %v57, %v58
    %v60 = vadd.f32 %v57, %v58
    %v61 = vmul.f32 %v56, 2.0
    %v62 = vsub.f32 %v60, %v61
    %v63 = vmul.f32 %v59, %v62
    %vm64 = vcmask 261120
    %v65 = vsel %vm64, %v63, 0.0
    %66 = vadd.xlane.f32.xlu0 %v65
    %v67 = vpop.xlane.xlu0 %66
    %v68 = vadd.f32 %v67, 1.0
    %v69 = vmax.f32 %v68, 0.0
    %s70 = smul.u32 0, 8
    %v71 = vlaneseq
    %v72 = vshrl.u32 %v71, 7
    %v73 = vstv %s70
    %v74 = vadd.s32 %v73, %v72
    %vm75 = vcmp.lt.s32.totalorder %v74, 8
    %v76 = vsel %vm75, %v69, 0.0
    %vm77 = vcmask 7168
    %v78 = vsel %vm77, %v76, 0.0
    %79 = vadd.xlane.f32.xlu0 %v78
    %v80 = vpop.xlane.xlu0 %79
    %v81 = vrot.slane %v80, 4
    %v82 = vadd.f32 %v80, %v81
    %v83 = vrot.slane %v82, 2
    %v84 = vadd.f32 %v82, %v83
    %v85 = vrot.slane %v84, 1
    %v86 = vadd.f32 %v84, %v85
    %s87 = vtos %v86
    %v88 = vstv %s87
    %89 = vst [vmem:[#allocation8] sm:$0xff] %v88
    // Predicated region
    $region26: #{tpu_custom_call.1} parent=1 // pred_check
      _
    $region27: #{tpu_custom_call.1} parent=1 // pred_check_branch
      %91 = sbr.rel (0) target = $region29
    $region28: #{tpu_custom_call.1} parent=1 // pred_region
      %93 = vsyncadd [#allocation4], 0
      %s95 = sshll.u32 [#allocation8], 4
      %s96 = int_to_ptr.vmem [resolvable:$true] %s95
      %s97 = sshll.u32 %s3, 4
      %s98 = int_to_ptr.hbm [resolvable:$true] %s97
      %100 = dma.vmem_to_hbm [thread:$0]  %s96, 128, %s98, [#allocation4]
    $region29: #{tpu_custom_call.1} parent=1 // pred_fallthru
      _
    // Predicated region
    $region30: #{tpu_custom_call.1} parent=1 // pred_check
      _
    $region31: #{tpu_custom_call.1} parent=1 // pred_check_branch
      %102 = sbr.rel (0) target = $region33
    $region32: #{tpu_custom_call.1} parent=1 // pred_region
      %104 = dma.done [#allocation4], 128
    $region33: #{tpu_custom_call.1} parent=1 // pred_fallthru
      _
    %105 = vsyncpa [#allocation3], 1
    %106 = vsyncpa [#allocation6], 1
    %107 = vsyncpa [#allocation4], 1

</llo_original>
